<compile_context>
chip_gen: v7x
topology: tpu7x:2x2x1
jax: 0.10.0
libtpu: 0.0.40
codegen_flags: <defaults>
</compile_context>

<pallas_src>
import jax
import jax.numpy as jnp
from jax.experimental import pallas as pl
from jax.experimental.pallas import tpu as pltpu


def _round_up(n: int, m: int) -> int:
    return ((n + m - 1) // m) * m


def _resblock_kernel(x_ref, w_ref, b_ref, o_ref):
    # MXU matmul (f32 acc) + bias + SiLU (EUP sigmoid) + residual, all in VMEM.
    x = x_ref[...]
    h = jnp.dot(x, w_ref[...], preferred_element_type=jnp.float32)
    h = h + b_ref[...].astype(jnp.float32)          # (1, Dp) broadcasts over rows
    silu = h * jax.nn.sigmoid(h)
    o_ref[...] = (x.astype(jnp.float32) + silu).astype(o_ref.dtype)


def _resblock_2d(xp: jax.Array, wp: jax.Array, bp: jax.Array, tm: int) -> jax.Array:
    """xp: [Rp, Dp] packed activations (Rp % tm == 0); wp: [Dp, Dp]; bp: [Dp]."""
    Rp, Dp = xp.shape
    assert Rp % tm == 0 and wp.shape == (Dp, Dp) and bp.shape == (Dp,)
    bp2 = bp.reshape(1, Dp)

    itemsize = jnp.dtype(xp.dtype).itemsize
    cost = pl.CostEstimate(
        flops=2 * Rp * Dp * Dp + 6 * Rp * Dp,
        transcendentals=Rp * Dp,
        bytes_accessed=(2 * Rp * Dp + Dp * Dp + Dp) * itemsize,
    )

    return pl.pallas_call(
        _resblock_kernel,
        out_shape=jax.ShapeDtypeStruct((Rp, Dp), xp.dtype),
        grid_spec=pltpu.PrefetchScalarGridSpec(
            num_scalar_prefetch=0,
            grid=(Rp // tm,),
            in_specs=[
                pl.BlockSpec((tm, Dp), lambda i: (i, 0)),   # x row tile (pipelined)
                pl.BlockSpec((Dp, Dp), lambda i: (0, 0)),   # weight, VMEM-resident
                pl.BlockSpec((1, Dp), lambda i: (0, 0)),    # bias row, VMEM-resident
            ],
            out_specs=pl.BlockSpec((tm, Dp), lambda i: (i, 0)),
        ),
        compiler_params=pltpu.CompilerParams(
            dimension_semantics=("parallel",),              # megacore row-tile sharding
        ),
        cost_estimate=cost,
    )(xp, wp, bp2)


def resblock_forward(x: jax.Array, w: jax.Array, b: jax.Array,
                     *, tm_max: int = 2048) -> jax.Array:
    """x: [..., exit_dim]; w: [D, D] (pre-transposed vs torch weight); b: [D]."""
    D = x.shape[-1]
    assert w.shape == (D, D) and b.shape == (D,)
    lead = x.shape[:-1]
    x2d = x.reshape(-1, D)
    R = x2d.shape[0]

    # Lane-dense packing: fold `pack` consecutive rows into one 128-wide row.
    pack = 128 // D if (D < 128 and 128 % D == 0) else 1
    Dp = D * pack
    if pack > 1:
        wp = jnp.kron(jnp.eye(pack, dtype=w.dtype), w)      # block-diagonal weight
        bp = jnp.tile(b, pack)
    else:
        wp, bp = w, b

    # Row padding: packed-row count must be a multiple of the row tile TM.
    rp = -(-R // pack)                                       # packed rows needed
    tm = min(tm_max, _round_up(max(rp, 1), 8))               # (8,128) tile rule
    rp_pad = _round_up(rp, tm)
    rows_needed = rp_pad * pack
    if rows_needed != R:
        x2d = jnp.pad(x2d, ((0, rows_needed - R), (0, 0)))
    xp = x2d.reshape(rp_pad, Dp)                             # contiguous, free

    yp = _resblock_2d(xp, wp, bp, tm)
    y2d = yp.reshape(rows_needed, D)[:R]
    return y2d.reshape(*lead, D)


def _reference(x, w, b):
    h = x @ w + b
    return x + h * jax.nn.sigmoid(h)


if __name__ == "__main__":
    # Shapes consistent with the module: batch=2, seq=8, exit_dim=32.
    batch, seq, exit_dim = 2, 8, 32
    key = jax.random.PRNGKey(0)
    kx, kw, kb = jax.random.split(key, 3)

    # Deterministic synthetic parameters (nn.Linear(exit_dim, exit_dim)).
    # w is the transpose of torch's Linear.weight, so the kernel uses x @ w.
    w = jax.random.normal(kw, (exit_dim, exit_dim), dtype=jnp.float32) * 0.05
    b = jax.random.normal(kb, (exit_dim,), dtype=jnp.float32) * 0.05
    x = jax.random.normal(kx, (batch, seq, exit_dim), dtype=jnp.float32)

    y = jax.block_until_ready(resblock_forward(x, w, b))
    y_ref = _reference(x, w, b)
    assert y.shape == x.shape
    assert jnp.allclose(y, y_ref, atol=1e-5, rtol=1e-5), "mismatch vs reference"

    # Second check: row count not a multiple of the packing factor / tile
    # (exercises the wrapper's padding + slicing path).
    kx2 = jax.random.PRNGKey(1)
    x_odd = jax.random.normal(kx2, (3, 37, exit_dim), dtype=jnp.float32)
    y_odd = jax.block_until_ready(resblock_forward(x_odd, w, b))
    assert jnp.allclose(y_odd, _reference(x_odd, w, b), atol=1e-5, rtol=1e-5)

    print("KERNEL_OK")
</pallas_src>

<mosaic_0001>
module attributes {stable_mosaic.version = 11 : i64} {
  func.func @_resblock_kernel(%arg0: i32, %arg1: memref<8x128xf32, #tpu.memory_space<vmem>>, %arg2: memref<128x128xf32, #tpu.memory_space<vmem>>, %arg3: memref<1x128xf32, #tpu.memory_space<vmem>>, %arg4: memref<8x128xf32, #tpu.memory_space<vmem>>) attributes {dimension_semantics = [#tpu.dimension_semantics<parallel>], iteration_bounds = array<i64: 1>, scalar_prefetch = 0 : i64, scratch_operands = 0 : i64, tpu.core_type = #tpu.core_type<tc>, window_params = [{transform_indices = @transform_0, window_bounds = array<i64: 8, 128>}, {pipeline_mode = #tpu.pipeline_mode<synchronous>, transform_indices = @transform_1, window_bounds = array<i64: 128, 128>}, {pipeline_mode = #tpu.pipeline_mode<synchronous>, transform_indices = @transform_2, window_bounds = array<i64: 1, 128>}, {transform_indices = @transform_3, window_bounds = array<i64: 8, 128>}]} {
    %c0 = arith.constant 0 : index
    %c0_0 = arith.constant 0 : index
    %0 = vector.load %arg1[%c0, %c0_0] : memref<8x128xf32, #tpu.memory_space<vmem>>, vector<8x128xf32>
    %c0_1 = arith.constant 0 : index
    %c0_2 = arith.constant 0 : index
    %1 = vector.load %arg2[%c0_1, %c0_2] : memref<128x128xf32, #tpu.memory_space<vmem>>, vector<128x128xf32>
    %cst = arith.constant dense<0.000000e+00> : vector<8x128xf32>
    %2 = tpu.matmul %0, %1, %cst {dimension_numbers = #tpu.dot_dimension_numbers<[1], [0], [0], [1], [0, 0, 1, 1], [], []>} : vector<8x128xf32>, vector<128x128xf32>, vector<8x128xf32> -> vector<8x128xf32>
    %c0_3 = arith.constant 0 : index
    %c0_4 = arith.constant 0 : index
    %3 = vector.load %arg3[%c0_3, %c0_4] : memref<1x128xf32, #tpu.memory_space<vmem>>, vector<1x128xf32>
    %4 = vector.broadcast %3 : vector<1x128xf32> to vector<8x128xf32>
    %5 = arith.addf %2, %4 : vector<8x128xf32>
    %6 = arith.negf %5 : vector<8x128xf32>
    %7 = math.exp %6 : vector<8x128xf32>
    %cst_5 = arith.constant 1.000000e+00 : f32
    %8 = vector.broadcast %cst_5 : f32 to vector<8x128xf32>
    %9 = arith.addf %8, %7 : vector<8x128xf32>
    %10 = arith.divf %8, %9 : vector<8x128xf32>
    %11 = arith.mulf %5, %10 : vector<8x128xf32>
    %12 = arith.addf %0, %11 : vector<8x128xf32>
    %c0_6 = arith.constant 0 : index
    %c0_7 = arith.constant 0 : index
    %13 = vector.load %arg4[%c0_6, %c0_7] : memref<8x128xf32, #tpu.memory_space<vmem>>, vector<8x128xf32>
    tpu.vector_store %arg4[%c0_6, %c0_7], %12 {strides = array<i32>} : memref<8x128xf32, #tpu.memory_space<vmem>>, vector<8x128xf32>,
    return
  }
  func.func @transform_0(%arg0: i32) -> (i32, i32) {
    %c0_i32 = arith.constant 0 : i32
    %c0_i32_0 = arith.constant 0 : i32
    return %arg0, %c0_i32 : i32, i32
  }
  func.func @transform_1(%arg0: i32) -> (i32, i32) {
    %c0_i32 = arith.constant 0 : i32
    %c0_i32_0 = arith.constant 0 : i32
    %c0_i32_1 = arith.constant 0 : i32
    return %c0_i32, %c0_i32_0 : i32, i32
  }
  func.func @transform_2(%arg0: i32) -> (i32, i32) {
    %c0_i32 = arith.constant 0 : i32
    %c0_i32_0 = arith.constant 0 : i32
    %c0_i32_1 = arith.constant 0 : i32
    return %c0_i32, %c0_i32_0 : i32, i32
  }
  func.func @transform_3(%arg0: i32) -> (i32, i32) {
    %c0_i32 = arith.constant 0 : i32
    %c0_i32_0 = arith.constant 0 : i32
    return %arg0, %c0_i32 : i32, i32
  }
}

</mosaic_0001>

<llo_original>
// kernel: tpu_custom_call.1
$region0: #{tpu_custom_call.1}
  #allocation0 [shape = 'u32[]', space=smem, size = 0x4, offset = 0x4, fixed_abs, tag = 'smem constant byte address 0x4 - core index']
  #allocation1 [shape = 'u32[144,128]{1,0:T(1,128)}', space=vmem, size = 0x12000, scoped, tag = 'internal scratch']
  %s0 = inlined_call_operand.hbm [shape: f32[8,128], index: 0, kind: input, shape index: {}]
  %s1 = inlined_call_operand.hbm [shape: f32[128,128], index: 1, kind: input, shape index: {}]
  %s2 = inlined_call_operand.vmem [shape: f32[1,128], index: 2, kind: input, shape index: {}]
  %s3 = inlined_call_operand.hbm [shape: f32[8,128], index: 3, kind: output, shape index: {}]
  %s4 = sld [smem:[#allocation0]]
  $region30: #{tpu_custom_call.1} parent=0
    _
  %s6 = ssub.s32 1, %s4
  %s7 = scalar_select 0, %s6, %s4
  $region1: #{tpu_custom_call.1} parent=0
    #allocation2 [shape = 'u8[4096]{0}', space=vmem, size = 0x1000, scoped, tag = 'input window, operand 0, single buffered']
    #allocation3 [shape = 's32[1]{0}', space=sflag, size = 0x4, scoped, tag = 'scoped memory for tpu_custom_call.1']
    #allocation4 [shape = 's32[1]{0}', space=sflag, size = 0x4, scoped, tag = 'scoped memory for tpu_custom_call.1']
    #allocation5 [shape = 'u8[65536]{0}', space=vmem, size = 0x10000, scoped, tag = 'input window, operand 1, single buffered']
    #allocation6 [shape = 's32[1]{0}', space=sflag, size = 0x4, scoped, tag = 'scoped memory for tpu_custom_call.1']
    #allocation7 [shape = 'u8[4096]{0}', space=vmem, size = 0x1000, scoped, tag = 'output window, operand 0, single buffered']
    %8 = vsyncpa [#allocation3], 0
    %9 = vsyncpa [#allocation6], 0
    %10 = vsyncpa [#allocation4], 0
    // Predicated region
    $region2: #{tpu_custom_call.1} parent=1 // pred_check
      _
    $region3: #{tpu_custom_call.1} parent=1 // pred_check_branch
      %12 = sbr.rel (0) target = $region5
    $region4: #{tpu_custom_call.1} parent=1 // pred_region
      %s14 = ssub.s32 128, 128
      %15 = vsyncadd [#allocation3], %s14
      %s17 = sshll.u32 [#allocation2], 4
      %s18 = int_to_ptr.vmem [resolvable:$true] %s17
      %20 = dma.hbm_to_vmem [thread:$0]  %s0, 128, %s18, [#allocation3]
    $region5: #{tpu_custom_call.1} parent=1 // pred_fallthru
      _
    // Predicated region
    $region6: #{tpu_custom_call.1} parent=1 // pred_check
      _
    $region7: #{tpu_custom_call.1} parent=1 // pred_check_branch
      %22 = sbr.rel (0) target = $region9
    $region8: #{tpu_custom_call.1} parent=1 // pred_region
      %s24 = ssub.s32 2048, 2048
      %25 = vsyncadd [#allocation6], %s24
      %s26 = sshll.u32 [#allocation5], 4
      %s27 = int_to_ptr.vmem [resolvable:$true] %s26
      %32 = dma.hbm_to_vmem [thread:$0]  %s1, 2048, %s27, [#allocation6], 128, 128, 8
    $region9: #{tpu_custom_call.1} parent=1 // pred_fallthru
      _
    // Predicated region
    $region10: #{tpu_custom_call.1} parent=1 // pred_check
      _
    $region11: #{tpu_custom_call.1} parent=1 // pred_check_branch
      %34 = sbr.rel (0) target = $region13
    $region12: #{tpu_custom_call.1} parent=1 // pred_region
      _
    $region13: #{tpu_custom_call.1} parent=1 // pred_fallthru
      _
    // Predicated region
    $region14: #{tpu_custom_call.1} parent=1 // pred_check
      _
    $region15: #{tpu_custom_call.1} parent=1 // pred_check_branch
      %36 = sbr.rel (0) target = $region17
    $region16: #{tpu_custom_call.1} parent=1 // pred_region
      %37 = dma.done [#allocation3], 128
    $region17: #{tpu_custom_call.1} parent=1 // pred_fallthru
      _
    // Predicated region
    $region18: #{tpu_custom_call.1} parent=1 // pred_check
      _
    $region19: #{tpu_custom_call.1} parent=1 // pred_check_branch
      %39 = sbr.rel (0) target = $region21
    $region20: #{tpu_custom_call.1} parent=1 // pred_region
      %40 = dma.done [#allocation6], 2048
    $region21: #{tpu_custom_call.1} parent=1 // pred_fallthru
      _
    %v41 = vld [vmem:[#allocation2] sm:$0xff]
    %v42 = vld [vmem:[#allocation5] sm:$0xff]
    %v43 = vld [vmem:[#allocation5 + $0x8] sm:$0xff]
    %v44 = vld [vmem:[#allocation5 + $0x10] sm:$0xff]
    %v45 = vld [vmem:[#allocation5 + $0x18] sm:$0xff]
    %v46 = vld [vmem:[#allocation5 + $0x20] sm:$0xff]
    %v47 = vld [vmem:[#allocation5 + $0x28] sm:$0xff]
    %v48 = vld [vmem:[#allocation5 + $0x30] sm:$0xff]
    %v49 = vld [vmem:[#allocation5 + $0x38] sm:$0xff]
    %v50 = vld [vmem:[#allocation5 + $0x40] sm:$0xff]
    %v51 = vld [vmem:[#allocation5 + $0x48] sm:$0xff]
    %v52 = vld [vmem:[#allocation5 + $0x50] sm:$0xff]
    %v53 = vld [vmem:[#allocation5 + $0x58] sm:$0xff]
    %v54 = vld [vmem:[#allocation5 + $0x60] sm:$0xff]
    %v55 = vld [vmem:[#allocation5 + $0x68] sm:$0xff]
    %v56 = vld [vmem:[#allocation5 + $0x70] sm:$0xff]
    %v57 = vld [vmem:[#allocation5 + $0x78] sm:$0xff]
    %v58 = vld [vmem:[%s2] sm:$0x1]
    %v60 = vlaneseq
    %v61 = vshrl.u32 %v60, 7
    %v62 = vsub.s32 0, %v61
    %v63 = vrot.slane %v58, %v62
    %65 = vmatprep.subr.mxu0 0.0
    %66 = vmatpush1.msra.mxu0 %v42
    %67 = vmatprep.subr.mxu0 0.0
    %68 = vmatpush1.msra.mxu0 %v43
    %69 = vmatprep.subr.mxu0 0.0
    %70 = vmatpush1.msra.mxu0 %v44
    %71 = vmatprep.subr.mxu0 0.0
    %72 = vmatpush1.msra.mxu0 %v45
    %73 = vmatprep.subr.mxu0 0.0
    %74 = vmatpush1.msra.mxu0 %v46
    %75 = vmatprep.subr.mxu0 0.0
    %76 = vmatpush1.msra.mxu0 %v47
    %77 = vmatprep.subr.mxu0 0.0
    %78 = vmatpush1.msra.mxu0 %v48
    %79 = vmatprep.subr.mxu0 0.0
    %80 = vmatpush1.msra.mxu0 %v49
    %81 = vmatprep.subr.mxu0 0.0
    %82 = vmatpush1.msra.mxu0 %v50
    %83 = vmatprep.subr.mxu0 0.0
    %84 = vmatpush1.msra.mxu0 %v51
    %85 = vmatprep.subr.mxu0 0.0
    %86 = vmatpush1.msra.mxu0 %v52
    %87 = vmatprep.subr.mxu0 0.0
    %88 = vmatpush1.msra.mxu0 %v53
    %89 = vmatprep.subr.mxu0 0.0
    %90 = vmatpush1.msra.mxu0 %v54
    %91 = vmatprep.subr.mxu0 0.0
    %92 = vmatpush1.msra.mxu0 %v55
    %93 = vmatprep.subr.mxu0 0.0
    %94 = vmatpush1.msra.mxu0 %v56
    %95 = vmatprep.subr.mxu0 0.0
    %96 = vmatpush1.msra.mxu0 %v57
    %97 = vmatprep.subr.mxu0 0.0
    %98 = vmatpush1.msra.mxu0 0.0
    %99 = vmatprep.subr.mxu0 0.0
    %100 = vmatpush1.msra.mxu0 0.0
    %101 = vmatprep.subr.mxu0 0.0
    %102 = vmatpush1.msra.mxu0 0.0
    %103 = vmatprep.subr.mxu0 0.0
    %104 = vmatpush1.msra.mxu0 0.0
    %105 = vmatprep.subr.mxu0 0.0
    %106 = vmatpush1.msra.mxu0 0.0
    %107 = vmatprep.subr.mxu0 0.0
    %108 = vmatpush1.msra.mxu0 0.0
    %109 = vmatprep.subr.mxu0 0.0
    %110 = vmatpush1.msra.mxu0 0.0
    %111 = vmatprep.subr.mxu0 0.0
    %112 = vmatpush1.msra.mxu0 0.0
    %113 = vmatprep.subr.mxu0 0.0
    %114 = vmatpush1.msra.mxu0 0.0
    %115 = vmatprep.subr.mxu0 0.0
    %116 = vmatpush1.msra.mxu0 0.0
    %117 = vmatprep.subr.mxu0 0.0
    %118 = vmatpush1.msra.mxu0 0.0
    %119 = vmatprep.subr.mxu0 0.0
    %120 = vmatpush1.msra.mxu0 0.0
    %121 = vmatprep.subr.mxu0 0.0
    %122 = vmatpush1.msra.mxu0 0.0
    %123 = vmatprep.subr.mxu0 0.0
    %124 = vmatpush1.msra.mxu0 0.0
    %125 = vmatprep.subr.mxu0 0.0
    %126 = vmatpush1.msra.mxu0 0.0
    %127 = vmatprep.subr.mxu0 0.0
    %128 = vmatpush1.msra.mxu0 0.0
    %129 = vmatprep.mubr.f32.mxu0 0.0
    %130 = vmatmul.mubr.f32.gmra.mrb[0].mxu0 %v41
    %v131 = vpop.f32.mrb[0].mxu0
    %v132 = vadd.f32 %v63, %v131
    %v133 = vpop.f32.mrb[0].mxu0
    %134 = vdwg.mxu0
    %v135 = vxor.u32 %v132, 2147483648
    %v136 = vmul.f32 %v135, 1.442695
    %v137 = vpow.pop %v136
    %v138 = vadd.f32 %v137, 1.0
    %v139 = vrcp.pop %v138
    %v140 = vmul.f32 1.0, %v139
    %v141 = vmul.f32 %v132, %v140
    %v142 = vadd.f32 %v41, %v141
    %143 = vst [vmem:[#allocation7] sm:$0xff] %v142
    // Predicated region
    $region22: #{tpu_custom_call.1} parent=1 // pred_check
      _
    $region23: #{tpu_custom_call.1} parent=1 // pred_check_branch
      %145 = sbr.rel (0) target = $region25
    $region24: #{tpu_custom_call.1} parent=1 // pred_region
      %s147 = ssub.s32 128, 128
      %148 = vsyncadd [#allocation4], %s147
      %s150 = sshll.u32 [#allocation7], 4
      %s151 = int_to_ptr.vmem [resolvable:$true] %s150
      %153 = dma.vmem_to_hbm [thread:$0]  %s151, 128, %s3, [#allocation4]
    $region25: #{tpu_custom_call.1} parent=1 // pred_fallthru
      _
    // Predicated region
    $region26: #{tpu_custom_call.1} parent=1 // pred_check
      _
    $region27: #{tpu_custom_call.1} parent=1 // pred_check_branch
      %155 = sbr.rel (0) target = $region29
    $region28: #{tpu_custom_call.1} parent=1 // pred_region
      %156 = dma.done [#allocation4], 128
    $region29: #{tpu_custom_call.1} parent=1 // pred_fallthru
      _
    %157 = vsyncpa [#allocation3], 1
    %158 = vsyncpa [#allocation6], 1
    %159 = vsyncpa [#allocation4], 1

</llo_original>
